<compile_context>
chip_gen: v7x
topology: tpu7x:2x2x1
jax: 0.10.0
libtpu: 0.0.40
codegen_flags: <defaults>
</compile_context>

<pallas_src>
import math
import numpy as np
import jax
import jax.numpy as jnp
from jax.experimental import pallas as pl
from jax.experimental.pallas import tpu as pltpu

MAX_TILE_N = 1024  # lanes per grid step (multiple of 128)


# --------------- deterministic parameter construction (numpy glue) ----------

def fft_twiddle_np(n, forward=True, normalized=False):
    m = int(math.ceil(math.log2(n)))
    assert n == 1 << m, "n must be a power of 2"
    factors = []
    for log_size in range(1, m + 1):
        size = 1 << log_size
        angles = -np.arange(size // 2, dtype=np.float32) / size * 2.0 * math.pi
        if not forward:
            angles = -angles
        c, s = np.cos(angles), np.sin(angles)
        one, zero = np.ones_like(c), np.zeros_like(s)
        real = np.stack((np.stack((one, c), axis=-1),
                         np.stack((one, -c), axis=-1)), axis=-2)   # (size/2, 2, 2)
        imag = np.stack((np.stack((zero, s), axis=-1),
                         np.stack((zero, -s), axis=-1)), axis=-2)
        tf = np.stack((real, imag), axis=-1)                       # (size/2, 2, 2, 2)
        factors.append(np.tile(tf, (n // size, 1, 1, 1)))
    twiddle = np.stack(factors, axis=0)[None]                      # (1, m, n/2, 2, 2, 2)
    if normalized:
        twiddle = twiddle / math.sqrt(2)
    elif not forward:
        twiddle = twiddle / 2
    return twiddle.astype(np.float32)


def butterfly_transpose_conjugate_np(twiddle):
    tw = twiddle.copy()
    if tw.ndim == 6:
        tw[..., 1] *= -1
    return np.swapaxes(tw, 3, 4)


def bitreversal_permutation_np(n):
    m = int(round(math.log2(n)))
    perm = np.arange(n).reshape(n, 1)
    for _ in range(m):
        n1 = perm.shape[0] // 2
        perm = np.hstack((perm[:n1], perm[n1:]))
    return perm.squeeze(0)


def create_ramp_filter(f):
    # TODO(synk): AbstractFilter.create_filter is abstract in the source module;
    # the standard ramp filter 2*|f| (RampFilter) is used deterministically here.
    return (2.0 * np.abs(f)).astype(np.float32)


def stage_coefficients(twiddle, P, m):
    """Per-stage, per-output-position complex coefficients for the butterfly:
       out[p] = Wself[s, p] * in[p] + Wother[s, p] * in[p ^ (1 << s)]   (complex)
       Layout: (m, 4, P) with 4 = [Wself.re, Wself.im, Wother.re, Wother.im]."""
    coefs = np.zeros((m, 4, P), dtype=np.float32)
    p = np.arange(P)
    for s in range(m):
        st = 1 << s
        tw = twiddle[0, s].reshape(P // (2 * st), st, 2, 2, 2)  # [blk, k, i, j, re/im]
        blk = p // (2 * st)
        i = (p // st) % 2
        k = p % st
        wself = tw[blk, k, i, i]
        woth = tw[blk, k, i, 1 - i]
        coefs[s, 0] = wself[:, 0]
        coefs[s, 1] = wself[:, 1]
        coefs[s, 2] = woth[:, 0]
        coefs[s, 3] = woth[:, 1]
    return coefs


def _apply_stages_np(coefs, xr, xi, order):
    """Apply the stage recurrence to (P, B) real/imag planes (host-side, numpy)."""
    P = xr.shape[0]
    p = np.arange(P)
    for ls in order:
        st = 1 << ls
        wsr = coefs[ls, 0][:, None]
        wsi = coefs[ls, 1][:, None]
        wor = coefs[ls, 2][:, None]
        woi = coefs[ls, 3][:, None]
        pxr, pxi = xr[p ^ st], xi[p ^ st]
        yr = wsr * xr - wsi * xi + wor * pxr - woi * pxi
        yi = wsr * xi + wsi * xr + wor * pxi + woi * pxr
        xr, xi = yr, yi
    return xr, xi


def make_butterfly_filter_params(input_size):
    S = int(input_size)
    P = max(64, int(2 ** math.ceil(math.log2(2 * S))))
    m = int(round(math.log2(P)))
    assert P == 1 << m
    tw_ifft = fft_twiddle_np(P, forward=False, normalized=True)   # (1, m, P/2, 2, 2, 2)
    tw_fft = butterfly_transpose_conjugate_np(tw_ifft)
    freqs = np.fft.fftfreq(P).astype(np.float32)
    fourier_filter = create_ramp_filter(freqs)
    br = bitreversal_permutation_np(P)
    filt_br = fourier_filter[br].astype(np.float32)

    # Dense operator W (S, S): column j = Re{ butterfly_ifft(filt_br * butterfly_fft(e_j)) }[:S]
    # built from the stage-coefficient recurrence (independent of the twiddle-tensor reference
    # used in the correctness check below).
    coef_fft = stage_coefficients(tw_fft, P, m)
    coef_ifft = stage_coefficients(tw_ifft, P, m)
    xr = np.zeros((P, S), np.float32)
    xr[np.arange(S), np.arange(S)] = 1.0
    xi = np.zeros_like(xr)
    xr, xi = _apply_stages_np(coef_fft, xr, xi, range(m - 1, -1, -1))  # fft: decreasing stride
    xr = xr * filt_br[:, None]
    xi = xi * filt_br[:, None]
    xr, _ = _apply_stages_np(coef_ifft, xr, xi, range(m))              # ifft: increasing stride
    W = xr[:S, :]                                                      # (S, S)

    S_pad = max(8, -(-S // 8) * 8)       # multiple of 8 -> clean (8,128) tiling, unmasked stores
    W_pad = np.zeros((S_pad, S_pad), np.float32)
    W_pad[:S, :S] = W

    return dict(
        input_size=S, P=P, m=m, S_pad=S_pad,
        W_pad=jnp.asarray(W_pad),
        # numpy copies kept for the independent reference check
        tw_fft=tw_fft, tw_ifft=tw_ifft, filt_br_np=filt_br,
    )


# ----------------------------- Pallas kernel --------------------------------

def _butterfly_filter_matmul_kernel(w_ref, x_ref, o_ref):
    # One MXU matmul per lane tile: (S_pad, S_pad) @ (S_pad, TILE_N) -> (S_pad, TILE_N).
    o_ref[...] = jnp.dot(w_ref[...], x_ref[...],
                         preferred_element_type=jnp.float32)


def _choose_tile_n(n128):
    # Big lane tiles amortize per-grid-step overhead (~0.35us each); cap so the parallel
    # grid keeps >= 2 steps when possible (v7x has 2 TensorCores).
    half = max(128, (n128 // 2) // 128 * 128)
    return min(MAX_TILE_N, half)


def butterfly_filter_forward(x, params):
    b, c, S, A = x.shape
    assert S == params["input_size"]
    W = params["W_pad"]                      # (S_pad, S_pad) f32
    S_pad = params["S_pad"]
    N = b * c * A
    n128 = pl.cdiv(N, 128) * 128
    TILE_N = _choose_tile_n(n128)
    N_pad = pl.cdiv(N, TILE_N) * TILE_N

    # Reference layout: x.transpose(2,3).reshape(N, S) is the per-(b,c,angle) signal.
    # The kernel consumes its transpose (S, N) so the big batch axis is lane-dense.
    xt = jnp.transpose(x, (0, 1, 3, 2)).reshape(N, S).astype(jnp.float32).T   # (S, N)
    if S_pad == S and N_pad == N:
        x_sn = xt                            # no padded HBM intermediate at all
    else:
        x_sn = jnp.zeros((S_pad, N_pad), jnp.float32).at[:S, :N].set(xt)

    proj_t = pl.pallas_call(
        _butterfly_filter_matmul_kernel,
        out_shape=jax.ShapeDtypeStruct((S_pad, N_pad), jnp.float32),
        grid=(N_pad // TILE_N,),
        in_specs=[
            pl.BlockSpec((S_pad, S_pad), lambda i: (0, 0)),     # W stays resident in VMEM
            pl.BlockSpec((S_pad, TILE_N), lambda i: (0, i)),
        ],
        out_specs=pl.BlockSpec((S_pad, TILE_N), lambda i: (0, i)),
        compiler_params=pltpu.CompilerParams(
            dimension_semantics=("parallel",),
            # blocks are tiny (<= a few hundred KiB double-buffered); default VMEM limit is ample
        ),
    )(W, x_sn)

    # (S, N) == projection.t(); same (peculiar) reshape as the PyTorch module.
    return proj_t[:S, :N].reshape(b, c, S, A)


# --------------------- numpy reference (semantics check) --------------------

def _ref_butterfly_mult_untied_complex(twiddle, inp, increasing_stride):
    batch, n, _ = inp.shape
    m = int(round(math.log2(n)))
    out = inp.astype(np.float32)
    order = range(m) if increasing_stride else range(m - 1, -1, -1)
    for log_stride in order:
        st = 1 << log_stride
        t = twiddle[0, log_stride].reshape(n // (2 * st), st, 2, 2, 2)
        t = np.transpose(t, (0, 2, 3, 1, 4))              # (nblk, 2, 2, st, 2)
        o = out.reshape(batch, n // (2 * st), 1, 2, st, 2)
        tr, ti = t[None, ..., 0], t[None, ..., 1]
        xr, xi = o[..., 0], o[..., 1]
        pr = (tr * xr - ti * xi).sum(axis=3)
        pi = (tr * xi + ti * xr).sum(axis=3)
        out = np.stack([pr, pi], axis=-1).reshape(batch, n, 2)
    return out


def _ref_forward(x, params):
    x = np.asarray(x, np.float32)
    b, c, S, A = x.shape
    P = params["P"]
    N = b * c * A
    xt = np.transpose(x, (0, 1, 3, 2)).reshape(N, S)
    padded = np.zeros((N, P, 2), np.float32)
    padded[:, :S, 0] = xt
    y = _ref_butterfly_mult_untied_complex(params["tw_fft"], padded, increasing_stride=False)
    y = y * params["filt_br_np"][None, :, None]
    y = _ref_butterfly_mult_untied_complex(params["tw_ifft"], y, increasing_stride=True)
    proj = y[:, :S, 0]
    return proj.T.reshape(b, c, S, A)


# ----------------------------------- main ------------------------------------

if __name__ == "__main__":
    key = jax.random.PRNGKey(0)
    b, c, input_size, nangles = 2, 4, 16, 16
    x = jax.random.normal(key, (b, c, input_size, nangles), dtype=jnp.float32)

    params = make_butterfly_filter_params(input_size)
    out = butterfly_filter_forward(x, params)
    out = jax.block_until_ready(out)

    assert out.shape == (b, c, input_size, nangles)
    ref = _ref_forward(np.asarray(x), params)
    np.testing.assert_allclose(np.asarray(out), ref, rtol=5e-3, atol=5e-3)

    print("KERNEL_OK")
</pallas_src>

<mosaic_0001>
module attributes {stable_mosaic.version = 11 : i64} {
  func.func @_butterfly_filter_matmul_kernel(%arg0: i32, %arg1: memref<16x16xf32, #tpu.memory_space<vmem>>, %arg2: memref<16x128xf32, #tpu.memory_space<vmem>>, %arg3: memref<16x128xf32, #tpu.memory_space<vmem>>) attributes {dimension_semantics = [#tpu.dimension_semantics<parallel>], iteration_bounds = array<i64: 1>, scalar_prefetch = 0 : i64, scratch_operands = 0 : i64, tpu.core_type = #tpu.core_type<tc>, window_params = [{pipeline_mode = #tpu.pipeline_mode<synchronous>, transform_indices = @transform_0, window_bounds = array<i64: 16, 16>}, {transform_indices = @transform_1, window_bounds = array<i64: 16, 128>}, {transform_indices = @transform_2, window_bounds = array<i64: 16, 128>}]} {
    %c0 = arith.constant 0 : index
    %c0_0 = arith.constant 0 : index
    %0 = vector.load %arg1[%c0, %c0_0] : memref<16x16xf32, #tpu.memory_space<vmem>>, vector<16x16xf32>
    %c0_1 = arith.constant 0 : index
    %c0_2 = arith.constant 0 : index
    %1 = vector.load %arg2[%c0_1, %c0_2] : memref<16x128xf32, #tpu.memory_space<vmem>>, vector<16x128xf32>
    %cst = arith.constant dense<0.000000e+00> : vector<16x128xf32>
    %2 = tpu.matmul %0, %1, %cst {dimension_numbers = #tpu.dot_dimension_numbers<[1], [0], [0], [1], [0, 0, 1, 1], [], []>} : vector<16x16xf32>, vector<16x128xf32>, vector<16x128xf32> -> vector<16x128xf32>
    %c0_3 = arith.constant 0 : index
    %c0_4 = arith.constant 0 : index
    %3 = vector.load %arg3[%c0_3, %c0_4] : memref<16x128xf32, #tpu.memory_space<vmem>>, vector<16x128xf32>
    tpu.vector_store %arg3[%c0_3, %c0_4], %2 {strides = array<i32>} : memref<16x128xf32, #tpu.memory_space<vmem>>, vector<16x128xf32>,
    return
  }
  func.func @transform_0(%arg0: i32) -> (i32, i32) {
    %c0_i32 = arith.constant 0 : i32
    %c0_i32_0 = arith.constant 0 : i32
    %c0_i32_1 = arith.constant 0 : i32
    return %c0_i32, %c0_i32_0 : i32, i32
  }
  func.func @transform_1(%arg0: i32) -> (i32, i32) {
    %c0_i32 = arith.constant 0 : i32
    %c0_i32_0 = arith.constant 0 : i32
    return %c0_i32, %arg0 : i32, i32
  }
  func.func @transform_2(%arg0: i32) -> (i32, i32) {
    %c0_i32 = arith.constant 0 : i32
    %c0_i32_0 = arith.constant 0 : i32
    return %c0_i32, %arg0 : i32, i32
  }
}

</mosaic_0001>

<llo_original>
// kernel: tpu_custom_call.1
$region0: #{tpu_custom_call.1}
  #allocation0 [shape = 'u32[]', space=smem, size = 0x4, offset = 0x4, fixed_abs, tag = 'smem constant byte address 0x4 - core index']
  #allocation1 [shape = 'u32[144,128]{1,0:T(1,128)}', space=vmem, size = 0x12000, scoped, tag = 'internal scratch']
  %s0 = inlined_call_operand.hbm [shape: f32[16,16], index: 0, kind: input, shape index: {}]
  %s1 = inlined_call_operand.hbm [shape: f32[16,128], index: 1, kind: input, shape index: {}]
  %s2 = inlined_call_operand.hbm [shape: f32[16,128], index: 2, kind: output, shape index: {}]
  %s3 = sld [smem:[#allocation0]]
  $region26: #{tpu_custom_call.1} parent=0
    _
  %s5 = ssub.s32 1, %s3
  %s6 = scalar_select 0, %s5, %s3
  $region1: #{tpu_custom_call.1} parent=0
    #allocation2 [shape = 'u8[8192]{0}', space=vmem, size = 0x2000, scoped, tag = 'input window, operand 0, single buffered']
    #allocation3 [shape = 's32[1]{0}', space=sflag, size = 0x4, scoped, tag = 'scoped memory for tpu_custom_call.1']
    #allocation4 [shape = 's32[1]{0}', space=sflag, size = 0x4, scoped, tag = 'scoped memory for tpu_custom_call.1']
    #allocation5 [shape = 'u8[8192]{0}', space=vmem, size = 0x2000, scoped, tag = 'input window, operand 1, single buffered']
    #allocation6 [shape = 's32[1]{0}', space=sflag, size = 0x4, scoped, tag = 'scoped memory for tpu_custom_call.1']
    #allocation7 [shape = 'u8[8192]{0}', space=vmem, size = 0x2000, scoped, tag = 'output window, operand 0, single buffered']
    %7 = vsyncpa [#allocation3], 0
    %8 = vsyncpa [#allocation6], 0
    %9 = vsyncpa [#allocation4], 0
    // Predicated region
    $region2: #{tpu_custom_call.1} parent=1 // pred_check
      _
    $region3: #{tpu_custom_call.1} parent=1 // pred_check_branch
      %11 = sbr.rel (0) target = $region5
    $region4: #{tpu_custom_call.1} parent=1 // pred_region
      %s13 = ssub.s32 256, 256
      %14 = vsyncadd [#allocation3], %s13
      %s15 = sshll.u32 [#allocation2], 4
      %s16 = int_to_ptr.vmem [resolvable:$true] %s15
      %21 = dma.hbm_to_vmem [thread:$0]  %s0, 256, %s16, [#allocation3], 128, 128, 8
    $region5: #{tpu_custom_call.1} parent=1 // pred_fallthru
      _
    // Predicated region
    $region6: #{tpu_custom_call.1} parent=1 // pred_check
      _
    $region7: #{tpu_custom_call.1} parent=1 // pred_check_branch
      %23 = sbr.rel (0) target = $region9
    $region8: #{tpu_custom_call.1} parent=1 // pred_region
      %s25 = ssub.s32 256, 256
      %26 = vsyncadd [#allocation6], %s25
      %s27 = sshll.u32 [#allocation5], 4
      %s28 = int_to_ptr.vmem [resolvable:$true] %s27
      %33 = dma.hbm_to_vmem [thread:$0]  %s1, 256, %s28, [#allocation6], 128, 128, 8
    $region9: #{tpu_custom_call.1} parent=1 // pred_fallthru
      _
    // Predicated region
    $region10: #{tpu_custom_call.1} parent=1 // pred_check
      _
    $region11: #{tpu_custom_call.1} parent=1 // pred_check_branch
      %35 = sbr.rel (0) target = $region13
    $region12: #{tpu_custom_call.1} parent=1 // pred_region
      %36 = dma.done [#allocation3], 256
    $region13: #{tpu_custom_call.1} parent=1 // pred_fallthru
      _
    // Predicated region
    $region14: #{tpu_custom_call.1} parent=1 // pred_check
      _
    $region15: #{tpu_custom_call.1} parent=1 // pred_check_branch
      %38 = sbr.rel (0) target = $region17
    $region16: #{tpu_custom_call.1} parent=1 // pred_region
      %39 = dma.done [#allocation6], 256
    $region17: #{tpu_custom_call.1} parent=1 // pred_fallthru
      _
    %v40 = vld [vmem:[#allocation2] sm:$0xff]
    %v41 = vld [vmem:[#allocation2 + $0x8] sm:$0xff]
    %v42 = vld [vmem:[#allocation5] sm:$0xff]
    %v43 = vld [vmem:[#allocation5 + $0x8] sm:$0xff]
    %vm44 = vcmask 130048
    %v46 = vsel %vm44, %v40, 0
    %v49 = vsel %vm44, %v41, 0
    %51 = vmatprep.subr.mxu0 0.0
    %52 = vmatpush1.msra.mxu0 %v42
    %53 = vmatprep.subr.mxu0 0.0
    %54 = vmatpush1.msra.mxu0 %v43
    %55 = vmatprep.subr.mxu0 0.0
    %56 = vmatpush1.msra.mxu0 0.0
    %57 = vmatprep.subr.mxu0 0.0
    %58 = vmatpush1.msra.mxu0 0.0
    %59 = vmatprep.subr.mxu0 0.0
    %60 = vmatpush1.msra.mxu0 0.0
    %61 = vmatprep.subr.mxu0 0.0
    %62 = vmatpush1.msra.mxu0 0.0
    %63 = vmatprep.subr.mxu0 0.0
    %64 = vmatpush1.msra.mxu0 0.0
    %65 = vmatprep.subr.mxu0 0.0
    %66 = vmatpush1.msra.mxu0 0.0
    %67 = vmatprep.subr.mxu0 0.0
    %68 = vmatpush1.msra.mxu0 0.0
    %69 = vmatprep.subr.mxu0 0.0
    %70 = vmatpush1.msra.mxu0 0.0
    %71 = vmatprep.subr.mxu0 0.0
    %72 = vmatpush1.msra.mxu0 0.0
    %73 = vmatprep.subr.mxu0 0.0
    %74 = vmatpush1.msra.mxu0 0.0
    %75 = vmatprep.subr.mxu0 0.0
    %76 = vmatpush1.msra.mxu0 0.0
    %77 = vmatprep.subr.mxu0 0.0
    %78 = vmatpush1.msra.mxu0 0.0
    %79 = vmatprep.subr.mxu0 0.0
    %80 = vmatpush1.msra.mxu0 0.0
    %81 = vmatprep.subr.mxu0 0.0
    %82 = vmatpush1.msra.mxu0 0.0
    %83 = vmatprep.subr.mxu0 0.0
    %84 = vmatpush1.msra.mxu0 0.0
    %85 = vmatprep.subr.mxu0 0.0
    %86 = vmatpush1.msra.mxu0 0.0
    %87 = vmatprep.subr.mxu0 0.0
    %88 = vmatpush1.msra.mxu0 0.0
    %89 = vmatprep.subr.mxu0 0.0
    %90 = vmatpush1.msra.mxu0 0.0
    %91 = vmatprep.subr.mxu0 0.0
    %92 = vmatpush1.msra.mxu0 0.0
    %93 = vmatprep.subr.mxu0 0.0
    %94 = vmatpush1.msra.mxu0 0.0
    %95 = vmatprep.subr.mxu0 0.0
    %96 = vmatpush1.msra.mxu0 0.0
    %97 = vmatprep.subr.mxu0 0.0
    %98 = vmatpush1.msra.mxu0 0.0
    %99 = vmatprep.subr.mxu0 0.0
    %100 = vmatpush1.msra.mxu0 0.0
    %101 = vmatprep.subr.mxu0 0.0
    %102 = vmatpush1.msra.mxu0 0.0
    %103 = vmatprep.subr.mxu0 0.0
    %104 = vmatpush1.msra.mxu0 0.0
    %105 = vmatprep.subr.mxu0 0.0
    %106 = vmatpush1.msra.mxu0 0.0
    %107 = vmatprep.subr.mxu0 0.0
    %108 = vmatpush1.msra.mxu0 0.0
    %109 = vmatprep.subr.mxu0 0.0
    %110 = vmatpush1.msra.mxu0 0.0
    %111 = vmatprep.subr.mxu0 0.0
    %112 = vmatpush1.msra.mxu0 0.0
    %113 = vmatprep.subr.mxu0 0.0
    %114 = vmatpush1.msra.mxu0 0.0
    %115 = vmatprep.mubr.f32.mxu0 0.0
    %116 = vmatmul.mubr.f32.gmra.mrb[0].mxu0 %v46
    %v117 = vpop.f32.mrb[0].mxu0
    %v118 = vadd.f32 0.0, %v117
    %v119 = vpop.f32.mrb[0].mxu0
    %120 = vmatprep.mubr.f32.mxu0 0.0
    %121 = vmatmul.mubr.f32.gmra.mrb[0].mxu0 %v49
    %v122 = vpop.f32.mrb[0].mxu0
    %v123 = vadd.f32 0.0, %v122
    %v124 = vpop.f32.mrb[0].mxu0
    %125 = vdwg.mxu0
    %126 = vst [vmem:[#allocation7] sm:$0xff] %v118
    %127 = vst [vmem:[#allocation7 + $0x8] sm:$0xff] %v123
    // Predicated region
    $region18: #{tpu_custom_call.1} parent=1 // pred_check
      _
    $region19: #{tpu_custom_call.1} parent=1 // pred_check_branch
      %129 = sbr.rel (0) target = $region21
    $region20: #{tpu_custom_call.1} parent=1 // pred_region
      %s131 = ssub.s32 256, 256
      %132 = vsyncadd [#allocation4], %s131
      %s133 = sshll.u32 [#allocation7], 4
      %s134 = int_to_ptr.vmem [resolvable:$true] %s133
      %139 = dma.vmem_to_hbm [thread:$0]  %s134, 256, %s2, [#allocation4], 128, 128, 8
    $region21: #{tpu_custom_call.1} parent=1 // pred_fallthru
      _
    // Predicated region
    $region22: #{tpu_custom_call.1} parent=1 // pred_check
      _
    $region23: #{tpu_custom_call.1} parent=1 // pred_check_branch
      %141 = sbr.rel (0) target = $region25
    $region24: #{tpu_custom_call.1} parent=1 // pred_region
      %142 = dma.done [#allocation4], 256
    $region25: #{tpu_custom_call.1} parent=1 // pred_fallthru
      _
    %143 = vsyncpa [#allocation3], 1
    %144 = vsyncpa [#allocation6], 1
    %145 = vsyncpa [#allocation4], 1

</llo_original>
